<compile_context>
chip_gen: v7x
topology: tpu7x:2x2x1
jax: 0.10.0
libtpu: 0.0.40
codegen_flags: <defaults>
</compile_context>

<pallas_src>
import jax
import jax.numpy as jnp
from jax import lax
from jax.experimental import pallas as pl
from jax.experimental.pallas import tpu as pltpu


# ------------------------------ kernel factory -------------------------------

def _make_fused_cin_kernel(num_fields, embed_dim, batch_tile, num_layers,
                           split_half, bf16_outer):
    F_ = num_fields
    E_ = embed_dim
    TB = batch_tile
    L = TB * E_

    def kernel(x_ref, *refs):
        # refs = (w0, b0, fcw0, w1, b1, fcw1, ..., sel, fc_b, out_ref)
        out_ref = refs[-1]
        fc_b_ref = refs[-2]
        sel_ref = refs[-3]

        x0_f32 = x_ref[...]                        # (F, L), lane = batch_slot*E + e
        acc = jnp.zeros((1, L), jnp.float32)       # running fc fold over all layers

        if bf16_outer:
            x0_mul = x0_f32.astype(jnp.bfloat16)   # cast once per tile
        else:
            x0_mul = x0_f32
        h_mul = x0_mul

        for i in range(num_layers):
            w_ref = refs[3 * i]                    # (C, F*H)  bf16, VMEM-resident
            b_ref = refs[3 * i + 1]                # (C, 1)    f32
            fcw_ref = refs[3 * i + 2]              # (1, c_keep) bf16
            H_ = h_mul.shape[0]

            # Outer product over fields, row-major channel = f*H + k (== torch .view).
            # Lane dim L (multiple of 128) untouched -> layout-preserving reshape
            # (H is a multiple of 8 in f32 / 16 in the bf16 path).
            z = (x0_mul[:, None, :] * h_mul[None, :, :]).reshape(F_ * H_, L)
            if not bf16_outer:
                z = z.astype(jnp.bfloat16)         # single cast feeding the MXU (v5e path)

            conv = jnp.dot(w_ref[...], z, preferred_element_type=jnp.float32)  # (C, L)
            out = jnp.maximum(conv + b_ref[...], 0.0)
            C_ = out.shape[0]

            if split_half and i != num_layers - 1:
                c_keep = C_ // 2
                x_keep = out[:c_keep]
                h_next = out[c_keep:]
            else:
                c_keep = C_
                x_keep = out
                h_next = out

            # Fold this layer's slice of the final Linear into the accumulator, so
            # concat(xs) is never materialized.
            acc = acc + jnp.dot(fcw_ref[...], x_keep.astype(jnp.bfloat16),
                                preferred_element_type=jnp.float32)             # (1, L)

            h_mul = h_next.astype(jnp.bfloat16) if bf16_outer else h_next

        # Per-batch-slot sum over the E lanes of each packed group via the resident
        # 0/1 selector (no lane<->sublane reshape, no per-step iota/compare work):
        #   y[tb] = sum_e acc[0, tb*E + e] + fc_b
        y = jnp.dot(acc.astype(jnp.bfloat16), sel_ref[...],
                    preferred_element_type=jnp.float32)                         # (1, TB)
        out_ref[0] = (y + fc_b_ref[...]).astype(out_ref.dtype)

    return kernel


# --------------------------------- wrapper -----------------------------------

def _choose_batch_tile(batch, embed_dim, lane_target=2048):
    """TB with TB*E a multiple of 128, ~lane_target lanes, clamped to padded batch."""
    tb_unit = 1
    while (tb_unit * embed_dim) % 128 != 0:
        tb_unit += 1
    desired = max(tb_unit, -(-max(lane_target, embed_dim) // embed_dim))
    desired = -(-desired // tb_unit) * tb_unit
    cover = -(-batch // tb_unit) * tb_unit          # smallest legal tile covering B
    return min(desired, cover)


def _keep_dims(conv_params, split_half):
    num_layers = len(conv_params)
    keeps = []
    for i, (w, _) in enumerate(conv_params):
        c = w.shape[0]
        keeps.append(c // 2 if (split_half and i != num_layers - 1) else c)
    return keeps


def _default_bf16_outer(num_fields, keep_dims):
    """bf16 outer product only on bf16-VALU chips and when H stays 16-aligned."""
    h_dims = [num_fields] + list(keep_dims[:-1])
    if not all(h % 16 == 0 for h in h_dims):
        return False
    try:
        kind = jax.devices()[0].device_kind.lower()
    except Exception:
        return False
    return ("v6" in kind) or ("v7" in kind) or ("tpu7" in kind)


def cin_forward(x, params, split_half=True, batch_tile=None, lane_target=2048,
                bf16_outer=None):
    conv_params, (fc_w, fc_b) = params
    num_layers = len(conv_params)
    B, F_, E_ = x.shape

    keeps = _keep_dims(conv_params, split_half)
    if bf16_outer is None:
        bf16_outer = _default_bf16_outer(F_, keeps)

    TB = batch_tile if batch_tile is not None else _choose_batch_tile(B, E_, lane_target)
    B_pad = ((B + TB - 1) // TB) * TB
    if B_pad != B:
        x = jnp.pad(x, ((0, B_pad - B), (0, 0), (0, 0)))
    num_tiles = B_pad // TB
    L = TB * E_

    # Pack batch into the lane dim next to embed: column index = b*E + e.
    x_packed = jnp.transpose(x, (1, 0, 2)).reshape(F_, B_pad * E_)

    # bf16 conv weights + pre-split bf16 fc segments (kernel accumulates in f32).
    w_list = [w.astype(jnp.bfloat16) for (w, _) in conv_params]
    b_list = [b for (_, b) in conv_params]
    fc_segs, off = [], 0
    for ck in keeps:
        fc_segs.append(fc_w[:, off:off + ck].astype(jnp.bfloat16))
        off += ck
    assert off == fc_w.shape[1]

    # Resident E-group selector: sel[l, tb] = 1 iff l // E == tb.
    lane = jnp.arange(L, dtype=jnp.int32)
    sel = (lane[:, None] // E_ == jnp.arange(TB, dtype=jnp.int32)[None, :]
           ).astype(jnp.bfloat16)

    kernel = _make_fused_cin_kernel(F_, E_, TB, num_layers, split_half, bf16_outer)

    in_specs = [pl.BlockSpec((F_, L), lambda bi: (0, bi))]
    inputs = [x_packed]
    for w, b, fseg in zip(w_list, b_list, fc_segs):
        # Constant index maps: weights/biases/fc segments DMA'd once, VMEM-resident.
        in_specs.append(pl.BlockSpec(w.shape, lambda bi: (0, 0)))
        inputs.append(w)
        in_specs.append(pl.BlockSpec(b.shape, lambda bi: (0, 0)))
        inputs.append(b)
        in_specs.append(pl.BlockSpec(fseg.shape, lambda bi: (0, 0)))
        inputs.append(fseg)
    in_specs.append(pl.BlockSpec(sel.shape, lambda bi: (0, 0)))
    inputs.append(sel)
    in_specs.append(pl.BlockSpec(fc_b.shape, lambda bi: (0, 0)))
    inputs.append(fc_b)

    out = pl.pallas_call(
        kernel,
        out_shape=jax.ShapeDtypeStruct((num_tiles, 1, TB), x.dtype),
        grid=(num_tiles,),
        in_specs=in_specs,
        out_specs=pl.BlockSpec((1, 1, TB), lambda bi: (bi, 0, 0)),
        compiler_params=pltpu.CompilerParams(
            dimension_semantics=("parallel",),
            vmem_limit_bytes=32 * 1024 * 1024,
        ),
    )(*inputs)

    return out.reshape(B_pad, 1)[:B]


# ------------------------------ params & reference ---------------------------

def init_params(key, input_dim, cross_layer_sizes, split_half=True):
    """Deterministic parameter init matching the module's __init__ shapes."""
    num_layers = len(cross_layer_sizes)
    conv_params = []
    prev_dim, fc_input_dim = input_dim, 0
    keys = jax.random.split(key, 2 * num_layers + 2)
    for i in range(num_layers):
        c = cross_layer_sizes[i]
        in_ch = input_dim * prev_dim
        w = 0.1 * jax.random.normal(keys[2 * i], (c, in_ch), dtype=jnp.float32)
        b = 0.1 * jax.random.normal(keys[2 * i + 1], (c, 1), dtype=jnp.float32)
        conv_params.append((w, b))
        if split_half and i != num_layers - 1:
            c //= 2
        prev_dim = c
        fc_input_dim += prev_dim
    fc_w = 0.1 * jax.random.normal(keys[-2], (1, fc_input_dim), dtype=jnp.float32)
    fc_b = 0.1 * jax.random.normal(keys[-1], (1, 1), dtype=jnp.float32)
    return conv_params, (fc_w, fc_b)


def cin_reference(x, params, split_half=True):
    """Plain-JAX reference mirroring the PyTorch forward exactly (f32)."""
    conv_params, (fc_w, fc_b) = params
    num_layers = len(conv_params)
    x0 = x[:, :, None, :]                            # (B, F, 1, E)
    h = x
    xs = []
    for i, (w, b) in enumerate(conv_params):
        z = x0 * h[:, None, :, :]                    # (B, F, H, E)
        B_, F_, H_, E_ = z.shape
        z = z.reshape(B_, F_ * H_, E_)
        out = jax.nn.relu(jnp.einsum('ck,bke->bce', w, z) + b[None, :, :])
        if split_half and i != num_layers - 1:
            c_half = out.shape[1] // 2
            x_keep, h = out[:, :c_half], out[:, c_half:]
        else:
            x_keep, h = out, out
        xs.append(x_keep)
    xcat = jnp.concatenate(xs, axis=1)
    pooled = jnp.sum(xcat, axis=2)
    return pooled @ fc_w.T + fc_b


# ----------------------------------- main -------------------------------------

if __name__ == "__main__":
    def _check(B, num_fields, embed_dim, cross_layer_sizes, split_half, seed, **kw):
        key = jax.random.fold_in(jax.random.PRNGKey(0), seed)
        kx, kp = jax.random.split(key)
        x = jax.random.normal(kx, (B, num_fields, embed_dim), dtype=jnp.float32)
        params = init_params(kp, num_fields, cross_layer_sizes, split_half)

        out = cin_forward(x, params, split_half, **kw)
        out = jax.block_until_ready(out)

        ref = cin_reference(x, params, split_half)
        assert out.shape == (B, 1), out.shape
        assert bool(jnp.all(jnp.isfinite(out)))
        assert bool(jnp.allclose(out, ref, rtol=5e-2, atol=5e-2)), (out, ref)

    # Small config matching the module (batch=2, fields=8, embed=16).
    _check(B=2, num_fields=8, embed_dim=16,
           cross_layer_sizes=(16, 16, 8), split_half=True, seed=0)
    # Padding path + split_half=False.
    _check(B=33, num_fields=8, embed_dim=16,
           cross_layer_sizes=(16, 16, 8), split_half=False, seed=1)
    # Multi-tile grid with the enlarged batch tile (TB=128 -> 3 grid steps).
    _check(B=300, num_fields=8, embed_dim=16,
           cross_layer_sizes=(16, 16, 8), split_half=True, seed=2)
    # Exercise the bf16 outer-product path explicitly (H multiples of 16).
    _check(B=40, num_fields=16, embed_dim=16,
           cross_layer_sizes=(32, 32), split_half=True, seed=3, bf16_outer=True)

    print("KERNEL_OK")
</pallas_src>

<mosaic_0001>
module attributes {stable_mosaic.version = 11 : i64} {
  func.func @kernel(%arg0: i32, %arg1: memref<8x128xf32, #tpu.memory_space<vmem>>, %arg2: memref<16x64xbf16, #tpu.memory_space<vmem>>, %arg3: memref<16x1xf32, #tpu.memory_space<vmem>>, %arg4: memref<1x8xbf16, #tpu.memory_space<vmem>>, %arg5: memref<16x64xbf16, #tpu.memory_space<vmem>>, %arg6: memref<16x1xf32, #tpu.memory_space<vmem>>, %arg7: memref<1x8xbf16, #tpu.memory_space<vmem>>, %arg8: memref<8x64xbf16, #tpu.memory_space<vmem>>, %arg9: memref<8x1xf32, #tpu.memory_space<vmem>>, %arg10: memref<1x8xbf16, #tpu.memory_space<vmem>>, %arg11: memref<128x8xbf16, #tpu.memory_space<vmem>>, %arg12: memref<1x1xf32, #tpu.memory_space<vmem>>, %arg13: memref<1x1x8xf32, #tpu.memory_space<vmem>>) attributes {dimension_semantics = [#tpu.dimension_semantics<parallel>], iteration_bounds = array<i64: 1>, scalar_prefetch = 0 : i64, scratch_operands = 0 : i64, tpu.core_type = #tpu.core_type<tc>, window_params = [{transform_indices = @transform_0, window_bounds = array<i64: 8, 128>}, {pipeline_mode = #tpu.pipeline_mode<synchronous>, transform_indices = @transform_1, window_bounds = array<i64: 16, 64>}, {pipeline_mode = #tpu.pipeline_mode<synchronous>, transform_indices = @transform_2, window_bounds = array<i64: 16, 1>}, {pipeline_mode = #tpu.pipeline_mode<synchronous>, transform_indices = @transform_3, window_bounds = array<i64: 1, 8>}, {pipeline_mode = #tpu.pipeline_mode<synchronous>, transform_indices = @transform_4, window_bounds = array<i64: 16, 64>}, {pipeline_mode = #tpu.pipeline_mode<synchronous>, transform_indices = @transform_5, window_bounds = array<i64: 16, 1>}, {pipeline_mode = #tpu.pipeline_mode<synchronous>, transform_indices = @transform_6, window_bounds = array<i64: 1, 8>}, {pipeline_mode = #tpu.pipeline_mode<synchronous>, transform_indices = @transform_7, window_bounds = array<i64: 8, 64>}, {pipeline_mode = #tpu.pipeline_mode<synchronous>, transform_indices = @transform_8, window_bounds = array<i64: 8, 1>}, {pipeline_mode = #tpu.pipeline_mode<synchronous>, transform_indices = @transform_9, window_bounds = array<i64: 1, 8>}, {pipeline_mode = #tpu.pipeline_mode<synchronous>, transform_indices = @transform_10, window_bounds = array<i64: 128, 8>}, {pipeline_mode = #tpu.pipeline_mode<synchronous>, transform_indices = @transform_11, window_bounds = array<i64: 1, 1>}, {transform_indices = @transform_12, window_bounds = array<i64: 1, 1, 8>}]} {
    %c0 = arith.constant 0 : index
    %c0_0 = arith.constant 0 : index
    %0 = vector.load %arg1[%c0, %c0_0] : memref<8x128xf32, #tpu.memory_space<vmem>>, vector<8x128xf32>
    %cst = arith.constant 0.000000e+00 : f32
    %1 = vector.broadcast %cst : f32 to vector<1x128xf32>
    %2 = vector.shape_cast %0 : vector<8x128xf32> to vector<8x1x128xf32>
    %3 = vector.shape_cast %0 : vector<8x128xf32> to vector<1x8x128xf32>
    %4 = vector.broadcast %2 : vector<8x1x128xf32> to vector<8x8x128xf32>
    %5 = vector.broadcast %3 : vector<1x8x128xf32> to vector<8x8x128xf32>
    %6 = arith.mulf %4, %5 : vector<8x8x128xf32>
    %7 = vector.shape_cast %6 : vector<8x8x128xf32> to vector<64x128xf32>
    %8 = arith.truncf %7 : vector<64x128xf32> to vector<64x128xbf16>
    %c0_1 = arith.constant 0 : index
    %c0_2 = arith.constant 0 : index
    %9 = vector.load %arg2[%c0_1, %c0_2] : memref<16x64xbf16, #tpu.memory_space<vmem>>, vector<16x64xbf16>
    %cst_3 = arith.constant dense<0.000000e+00> : vector<16x128xf32>
    %10 = tpu.matmul %9, %8, %cst_3 {dimension_numbers = #tpu.dot_dimension_numbers<[1], [0], [0], [1], [0, 0, 1, 1], [], []>} : vector<16x64xbf16>, vector<64x128xbf16>, vector<16x128xf32> -> vector<16x128xf32>
    %c0_4 = arith.constant 0 : index
    %c0_5 = arith.constant 0 : index
    %11 = vector.load %arg3[%c0_4, %c0_5] : memref<16x1xf32, #tpu.memory_space<vmem>>, vector<16x1xf32>
    %12 = vector.broadcast %11 : vector<16x1xf32> to vector<16x128xf32>
    %13 = arith.addf %10, %12 : vector<16x128xf32>
    %cst_6 = arith.constant 0.000000e+00 : f32
    %14 = vector.broadcast %cst_6 : f32 to vector<16x128xf32>
    %15 = arith.maximumf %13, %14 : vector<16x128xf32>
    %16 = vector.extract_strided_slice %15 {offsets = [0, 0], sizes = [8, 128], strides = [1, 1]} : vector<16x128xf32> to vector<8x128xf32>
    %17 = vector.extract_strided_slice %15 {offsets = [8, 0], sizes = [8, 128], strides = [1, 1]} : vector<16x128xf32> to vector<8x128xf32>
    %c0_7 = arith.constant 0 : index
    %c0_8 = arith.constant 0 : index
    %18 = vector.load %arg4[%c0_7, %c0_8] : memref<1x8xbf16, #tpu.memory_space<vmem>>, vector<1x8xbf16>
    %19 = arith.truncf %16 : vector<8x128xf32> to vector<8x128xbf16>
    %cst_9 = arith.constant dense<0.000000e+00> : vector<1x128xf32>
    %20 = tpu.matmul %18, %19, %cst_9 {dimension_numbers = #tpu.dot_dimension_numbers<[1], [0], [0], [1], [0, 0, 1, 1], [], []>} : vector<1x8xbf16>, vector<8x128xbf16>, vector<1x128xf32> -> vector<1x128xf32>
    %21 = arith.addf %1, %20 : vector<1x128xf32>
    %22 = vector.shape_cast %0 : vector<8x128xf32> to vector<8x1x128xf32>
    %23 = vector.shape_cast %17 : vector<8x128xf32> to vector<1x8x128xf32>
    %24 = vector.broadcast %22 : vector<8x1x128xf32> to vector<8x8x128xf32>
    %25 = vector.broadcast %23 : vector<1x8x128xf32> to vector<8x8x128xf32>
    %26 = arith.mulf %24, %25 : vector<8x8x128xf32>
    %27 = vector.shape_cast %26 : vector<8x8x128xf32> to vector<64x128xf32>
    %28 = arith.truncf %27 : vector<64x128xf32> to vector<64x128xbf16>
    %c0_10 = arith.constant 0 : index
    %c0_11 = arith.constant 0 : index
    %29 = vector.load %arg5[%c0_10, %c0_11] : memref<16x64xbf16, #tpu.memory_space<vmem>>, vector<16x64xbf16>
    %cst_12 = arith.constant dense<0.000000e+00> : vector<16x128xf32>
    %30 = tpu.matmul %29, %28, %cst_12 {dimension_numbers = #tpu.dot_dimension_numbers<[1], [0], [0], [1], [0, 0, 1, 1], [], []>} : vector<16x64xbf16>, vector<64x128xbf16>, vector<16x128xf32> -> vector<16x128xf32>
    %c0_13 = arith.constant 0 : index
    %c0_14 = arith.constant 0 : index
    %31 = vector.load %arg6[%c0_13, %c0_14] : memref<16x1xf32, #tpu.memory_space<vmem>>, vector<16x1xf32>
    %32 = vector.broadcast %31 : vector<16x1xf32> to vector<16x128xf32>
    %33 = arith.addf %30, %32 : vector<16x128xf32>
    %cst_15 = arith.constant 0.000000e+00 : f32
    %34 = vector.broadcast %cst_15 : f32 to vector<16x128xf32>
    %35 = arith.maximumf %33, %34 : vector<16x128xf32>
    %36 = vector.extract_strided_slice %35 {offsets = [0, 0], sizes = [8, 128], strides = [1, 1]} : vector<16x128xf32> to vector<8x128xf32>
    %37 = vector.extract_strided_slice %35 {offsets = [8, 0], sizes = [8, 128], strides = [1, 1]} : vector<16x128xf32> to vector<8x128xf32>
    %c0_16 = arith.constant 0 : index
    %c0_17 = arith.constant 0 : index
    %38 = vector.load %arg7[%c0_16, %c0_17] : memref<1x8xbf16, #tpu.memory_space<vmem>>, vector<1x8xbf16>
    %39 = arith.truncf %36 : vector<8x128xf32> to vector<8x128xbf16>
    %cst_18 = arith.constant dense<0.000000e+00> : vector<1x128xf32>
    %40 = tpu.matmul %38, %39, %cst_18 {dimension_numbers = #tpu.dot_dimension_numbers<[1], [0], [0], [1], [0, 0, 1, 1], [], []>} : vector<1x8xbf16>, vector<8x128xbf16>, vector<1x128xf32> -> vector<1x128xf32>
    %41 = arith.addf %21, %40 : vector<1x128xf32>
    %42 = vector.shape_cast %0 : vector<8x128xf32> to vector<8x1x128xf32>
    %43 = vector.shape_cast %37 : vector<8x128xf32> to vector<1x8x128xf32>
    %44 = vector.broadcast %42 : vector<8x1x128xf32> to vector<8x8x128xf32>
    %45 = vector.broadcast %43 : vector<1x8x128xf32> to vector<8x8x128xf32>
    %46 = arith.mulf %44, %45 : vector<8x8x128xf32>
    %47 = vector.shape_cast %46 : vector<8x8x128xf32> to vector<64x128xf32>
    %48 = arith.truncf %47 : vector<64x128xf32> to vector<64x128xbf16>
    %c0_19 = arith.constant 0 : index
    %c0_20 = arith.constant 0 : index
    %49 = vector.load %arg8[%c0_19, %c0_20] : memref<8x64xbf16, #tpu.memory_space<vmem>>, vector<8x64xbf16>
    %cst_21 = arith.constant dense<0.000000e+00> : vector<8x128xf32>
    %50 = tpu.matmul %49, %48, %cst_21 {dimension_numbers = #tpu.dot_dimension_numbers<[1], [0], [0], [1], [0, 0, 1, 1], [], []>} : vector<8x64xbf16>, vector<64x128xbf16>, vector<8x128xf32> -> vector<8x128xf32>
    %c0_22 = arith.constant 0 : index
    %c0_23 = arith.constant 0 : index
    %51 = vector.load %arg9[%c0_22, %c0_23] : memref<8x1xf32, #tpu.memory_space<vmem>>, vector<8x1xf32>
    %52 = vector.broadcast %51 : vector<8x1xf32> to vector<8x128xf32>
    %53 = arith.addf %50, %52 : vector<8x128xf32>
    %cst_24 = arith.constant 0.000000e+00 : f32
    %54 = vector.broadcast %cst_24 : f32 to vector<8x128xf32>
    %55 = arith.maximumf %53, %54 : vector<8x128xf32>
    %c0_25 = arith.constant 0 : index
    %c0_26 = arith.constant 0 : index
    %56 = vector.load %arg10[%c0_25, %c0_26] : memref<1x8xbf16, #tpu.memory_space<vmem>>, vector<1x8xbf16>
    %57 = arith.truncf %55 : vector<8x128xf32> to vector<8x128xbf16>
    %cst_27 = arith.constant dense<0.000000e+00> : vector<1x128xf32>
    %58 = tpu.matmul %56, %57, %cst_27 {dimension_numbers = #tpu.dot_dimension_numbers<[1], [0], [0], [1], [0, 0, 1, 1], [], []>} : vector<1x8xbf16>, vector<8x128xbf16>, vector<1x128xf32> -> vector<1x128xf32>
    %59 = arith.addf %41, %58 : vector<1x128xf32>
    %60 = arith.truncf %59 : vector<1x128xf32> to vector<1x128xbf16>
    %c0_28 = arith.constant 0 : index
    %c0_29 = arith.constant 0 : index
    %61 = vector.load %arg11[%c0_28, %c0_29] : memref<128x8xbf16, #tpu.memory_space<vmem>>, vector<128x8xbf16>
    %cst_30 = arith.constant dense<0.000000e+00> : vector<1x8xf32>
    %62 = tpu.matmul %60, %61, %cst_30 {dimension_numbers = #tpu.dot_dimension_numbers<[1], [0], [0], [1], [0, 0, 1, 1], [], []>} : vector<1x128xbf16>, vector<128x8xbf16>, vector<1x8xf32> -> vector<1x8xf32>
    %c0_31 = arith.constant 0 : index
    %c0_32 = arith.constant 0 : index
    %63 = vector.load %arg12[%c0_31, %c0_32] : memref<1x1xf32, #tpu.memory_space<vmem>>, vector<1x1xf32>
    %64 = vector.broadcast %63 : vector<1x1xf32> to vector<1x8xf32>
    %65 = arith.addf %62, %64 : vector<1x8xf32>
    %c0_33 = arith.constant 0 : index
    %c0_34 = arith.constant 0 : index
    %c0_35 = arith.constant 0 : index
    %66 = vector.load %arg13[%c0_33, %c0_34, %c0_35] : memref<1x1x8xf32, #tpu.memory_space<vmem>>, vector<1x1x8xf32>
    %67 = vector.shape_cast %66 : vector<1x1x8xf32> to vector<1x8xf32>
    %68 = vector.shape_cast %65 : vector<1x8xf32> to vector<1x1x8xf32>
    tpu.vector_store %arg13[%c0_33, %c0_34, %c0_35], %68 {strides = array<i32>} : memref<1x1x8xf32, #tpu.memory_space<vmem>>, vector<1x1x8xf32>,
    return
  }
  func.func @transform_0(%arg0: i32) -> (i32, i32) {
    %c0_i32 = arith.constant 0 : i32
    %c0_i32_0 = arith.constant 0 : i32
    return %c0_i32, %arg0 : i32, i32
  }
  func.func @transform_1(%arg0: i32) -> (i32, i32) {
    %c0_i32 = arith.constant 0 : i32
    %c0_i32_0 = arith.constant 0 : i32
    %c0_i32_1 = arith.constant 0 : i32
    return %c0_i32, %c0_i32_0 : i32, i32
  }
  func.func @transform_2(%arg0: i32) -> (i32, i32) {
    %c0_i32 = arith.constant 0 : i32
    %c0_i32_0 = arith.constant 0 : i32
    %c0_i32_1 = arith.constant 0 : i32
    return %c0_i32, %c0_i32_0 : i32, i32
  }
  func.func @transform_3(%arg0: i32) -> (i32, i32) {
    %c0_i32 = arith.constant 0 : i32
    %c0_i32_0 = arith.constant 0 : i32
    %c0_i32_1 = arith.constant 0 : i32
    return %c0_i32, %c0_i32_0 : i32, i32
  }
  func.func @transform_4(%arg0: i32) -> (i32, i32) {
    %c0_i32 = arith.constant 0 : i32
    %c0_i32_0 = arith.constant 0 : i32
    %c0_i32_1 = arith.constant 0 : i32
    return %c0_i32, %c0_i32_0 : i32, i32
  }
  func.func @transform_5(%arg0: i32) -> (i32, i32) {
    %c0_i32 = arith.constant 0 : i32
    %c0_i32_0 = arith.constant 0 : i32
    %c0_i32_1 = arith.constant 0 : i32
    return %c0_i32, %c0_i32_0 : i32, i32
  }
  func.func @transform_6(%arg0: i32) -> (i32, i32) {
    %c0_i32 = arith.constant 0 : i32
    %c0_i32_0 = arith.constant 0 : i32
    %c0_i32_1 = arith.constant 0 : i32
    return %c0_i32, %c0_i32_0 : i32, i32
  }
  func.func @transform_7(%arg0: i32) -> (i32, i32) {
    %c0_i32 = arith.constant 0 : i32
    %c0_i32_0 = arith.constant 0 : i32
    %c0_i32_1 = arith.constant 0 : i32
    return %c0_i32, %c0_i32_0 : i32, i32
  }
  func.func @transform_8(%arg0: i32) -> (i32, i32) {
    %c0_i32 = arith.constant 0 : i32
    %c0_i32_0 = arith.constant 0 : i32
    %c0_i32_1 = arith.constant 0 : i32
    return %c0_i32, %c0_i32_0 : i32, i32
  }
  func.func @transform_9(%arg0: i32) -> (i32, i32) {
    %c0_i32 = arith.constant 0 : i32
    %c0_i32_0 = arith.constant 0 : i32
    %c0_i32_1 = arith.constant 0 : i32
    return %c0_i32, %c0_i32_0 : i32, i32
  }
  func.func @transform_10(%arg0: i32) -> (i32, i32) {
    %c0_i32 = arith.constant 0 : i32
    %c0_i32_0 = arith.constant 0 : i32
    %c0_i32_1 = arith.constant 0 : i32
    return %c0_i32, %c0_i32_0 : i32, i32
  }
  func.func @transform_11(%arg0: i32) -> (i32, i32) {
    %c0_i32 = arith.constant 0 : i32
    %c0_i32_0 = arith.constant 0 : i32
    %c0_i32_1 = arith.constant 0 : i32
    return %c0_i32, %c0_i32_0 : i32, i32
  }
  func.func @transform_12(%arg0: i32) -> (i32, i32, i32) {
    %c0_i32 = arith.constant 0 : i32
    %c0_i32_0 = arith.constant 0 : i32
    %c0_i32_1 = arith.constant 0 : i32
    return %arg0, %c0_i32, %c0_i32_0 : i32, i32, i32
  }
}

</mosaic_0001>

<llo_original>
// kernel: tpu_custom_call.1
$region0: #{tpu_custom_call.1}
  #allocation0 [shape = 'u32[]', space=smem, size = 0x4, offset = 0x4, fixed_abs, tag = 'smem constant byte address 0x4 - core index']
  #allocation1 [shape = 'u32[144,128]{1,0:T(1,128)}', space=vmem, size = 0x12000, scoped, tag = 'internal scratch']
  #allocation2 [shape = 'f32[1,1]{1,0:T(1,128)S(1)}', space=vmem, size = 0x200, scoped, tag = 'scoped memory for tpu_custom_call.1']
  %s0 = inlined_call_operand.vmem [shape: f32[8,128], index: 0, kind: input, shape index: {}]
  %s1 = inlined_call_operand.vmem [shape: bf16[16,64], index: 1, kind: input, shape index: {}]
  %s2 = inlined_call_operand.vmem [shape: f32[16,1], index: 2, kind: input, shape index: {}]
  %s3 = inlined_call_operand.vmem [shape: bf16[1,8], index: 3, kind: input, shape index: {}]
  %s4 = inlined_call_operand.vmem [shape: bf16[16,64], index: 4, kind: input, shape index: {}]
  %s5 = inlined_call_operand.vmem [shape: f32[16,1], index: 5, kind: input, shape index: {}]
  %s6 = inlined_call_operand.vmem [shape: bf16[1,8], index: 6, kind: input, shape index: {}]
  %s7 = inlined_call_operand.vmem [shape: bf16[8,64], index: 7, kind: input, shape index: {}]
  %s8 = inlined_call_operand.vmem [shape: f32[8,1], index: 8, kind: input, shape index: {}]
  %s9 = inlined_call_operand.vmem [shape: bf16[1,8], index: 9, kind: input, shape index: {}]
  %s10 = inlined_call_operand.vmem [shape: bf16[128,8], index: 10, kind: input, shape index: {}]
  %s11 = inlined_call_operand.<no memory space> [shape: f32[1,1], index: 11, kind: input, shape index: {}]
  %s12 = inlined_call_operand.hbm [shape: f32[1,1,8], index: 12, kind: output, shape index: {}]
  %s13 = sld [smem:[#allocation0]]
  $region58: #{tpu_custom_call.1} parent=0
    _
  %s15 = ssub.s32 1, %s13
  %s16 = scalar_select 0, %s15, %s13
  %v17 = vstv %s11
  %18 = vst [vmem:[#allocation2] sm:$0x1] %v17
  $region1: #{tpu_custom_call.1} parent=0
    #allocation3 [shape = 'u8[512]{0}', space=vmem, size = 0x400, scoped, tag = 'output window, operand 0, single buffered']
    #allocation4 [shape = 's32[1]{0}', space=sflag, size = 0x4, scoped, tag = 'scoped memory for tpu_custom_call.1']
    %19 = vsyncpa [#allocation4], 0
    // Predicated region
    $region2: #{tpu_custom_call.1} parent=1 // pred_check
      _
    $region3: #{tpu_custom_call.1} parent=1 // pred_check_branch
      %21 = sbr.rel (0) target = $region5
    $region4: #{tpu_custom_call.1} parent=1 // pred_region
      _
    $region5: #{tpu_custom_call.1} parent=1 // pred_fallthru
      _
    // Predicated region
    $region6: #{tpu_custom_call.1} parent=1 // pred_check
      _
    $region7: #{tpu_custom_call.1} parent=1 // pred_check_branch
      %23 = sbr.rel (0) target = $region9
    $region8: #{tpu_custom_call.1} parent=1 // pred_region
      _
    $region9: #{tpu_custom_call.1} parent=1 // pred_fallthru
      _
    // Predicated region
    $region10: #{tpu_custom_call.1} parent=1 // pred_check
      _
    $region11: #{tpu_custom_call.1} parent=1 // pred_check_branch
      %25 = sbr.rel (0) target = $region13
    $region12: #{tpu_custom_call.1} parent=1 // pred_region
      _
    $region13: #{tpu_custom_call.1} parent=1 // pred_fallthru
      _
    // Predicated region
    $region14: #{tpu_custom_call.1} parent=1 // pred_check
      _
    $region15: #{tpu_custom_call.1} parent=1 // pred_check_branch
      %27 = sbr.rel (0) target = $region17
    $region16: #{tpu_custom_call.1} parent=1 // pred_region
      _
    $region17: #{tpu_custom_call.1} parent=1 // pred_fallthru
      _
    // Predicated region
    $region18: #{tpu_custom_call.1} parent=1 // pred_check
      _
    $region19: #{tpu_custom_call.1} parent=1 // pred_check_branch
      %29 = sbr.rel (0) target = $region21
    $region20: #{tpu_custom_call.1} parent=1 // pred_region
      _
    $region21: #{tpu_custom_call.1} parent=1 // pred_fallthru
      _
    // Predicated region
    $region22: #{tpu_custom_call.1} parent=1 // pred_check
      _
    $region23: #{tpu_custom_call.1} parent=1 // pred_check_branch
      %31 = sbr.rel (0) target = $region25
    $region24: #{tpu_custom_call.1} parent=1 // pred_region
      _
    $region25: #{tpu_custom_call.1} parent=1 // pred_fallthru
      _
    // Predicated region
    $region26: #{tpu_custom_call.1} parent=1 // pred_check
      _
    $region27: #{tpu_custom_call.1} parent=1 // pred_check_branch
      %33 = sbr.rel (0) target = $region29
    $region28: #{tpu_custom_call.1} parent=1 // pred_region
      _
    $region29: #{tpu_custom_call.1} parent=1 // pred_fallthru
      _
    // Predicated region
    $region30: #{tpu_custom_call.1} parent=1 // pred_check
      _
    $region31: #{tpu_custom_call.1} parent=1 // pred_check_branch
      %35 = sbr.rel (0) target = $region33
    $region32: #{tpu_custom_call.1} parent=1 // pred_region
      _
    $region33: #{tpu_custom_call.1} parent=1 // pred_fallthru
      _
    // Predicated region
    $region34: #{tpu_custom_call.1} parent=1 // pred_check
      _
    $region35: #{tpu_custom_call.1} parent=1 // pred_check_branch
      %37 = sbr.rel (0) target = $region37
    $region36: #{tpu_custom_call.1} parent=1 // pred_region
      _
    $region37: #{tpu_custom_call.1} parent=1 // pred_fallthru
      _
    // Predicated region
    $region38: #{tpu_custom_call.1} parent=1 // pred_check
      _
    $region39: #{tpu_custom_call.1} parent=1 // pred_check_branch
      %39 = sbr.rel (0) target = $region41
    $region40: #{tpu_custom_call.1} parent=1 // pred_region
      _
    $region41: #{tpu_custom_call.1} parent=1 // pred_fallthru
      _
    // Predicated region
    $region42: #{tpu_custom_call.1} parent=1 // pred_check
      _
    $region43: #{tpu_custom_call.1} parent=1 // pred_check_branch
      %41 = sbr.rel (0) target = $region45
    $region44: #{tpu_custom_call.1} parent=1 // pred_region
      _
    $region45: #{tpu_custom_call.1} parent=1 // pred_fallthru
      _
    // Predicated region
    $region46: #{tpu_custom_call.1} parent=1 // pred_check
      _
    $region47: #{tpu_custom_call.1} parent=1 // pred_check_branch
      %43 = sbr.rel (0) target = $region49
    $region48: #{tpu_custom_call.1} parent=1 // pred_region
      _
    $region49: #{tpu_custom_call.1} parent=1 // pred_fallthru
      _
    %v45 = vld [vmem:[%s0] sm:$0xff]
    %v47 = vcombine.high %v45, %v45
    %v49 = vunpack.c.l.s4 1966171168
    %v50 = vunpack.c.0.s8 %v49
    %v51 = vlaneseq
    %v52 = vshrl.u32 %v51, 7
    %v53 = vsub.s32 %v50, %v52
    %v54 = vrot.slane %v45, %v53
    %v56 = vunpack.c.l.s4 1966171168
    %v57 = vunpack.c.0.s8 %v56
    %v58 = vlaneseq
    %v59 = vshrl.u32 %v58, 7
    %v60 = vsub.s32 %v57, %v59
    %v61 = vrot.slane %v47, %v60
    %v62 = vcombine.high %v54, %v54
    %v63 = vcombine.high %v61, %v61
    %v65 = vunpack.c.l.s4 1966171168
    %v66 = vunpack.c.0.s8 %v65
    %v67 = vlaneseq
    %v68 = vshrl.u32 %v67, 7
    %v69 = vsub.s32 %v66, %v68
    %v70 = vrot.slane %v54, %v69
    %v72 = vunpack.c.l.s4 1966171168
    %v73 = vunpack.c.0.s8 %v72
    %v74 = vlaneseq
    %v75 = vshrl.u32 %v74, 7
    %v76 = vsub.s32 %v73, %v75
    %v77 = vrot.slane %v61, %v76
    %v79 = vunpack.c.l.s4 1966171168
    %v80 = vunpack.c.0.s8 %v79
    %v81 = vlaneseq
    %v82 = vshrl.u32 %v81, 7
    %v83 = vsub.s32 %v80, %v82
    %v84 = vrot.slane %v62, %v83
    %v86 = vunpack.c.l.s4 1966171168
    %v87 = vunpack.c.0.s8 %v86
    %v88 = vlaneseq
    %v89 = vshrl.u32 %v88, 7
    %v90 = vsub.s32 %v87, %v89
    %v91 = vrot.slane %v63, %v90
    %v92 = vcombine.high %v70, %v70
    %v93 = vcombine.high %v77, %v77
    %v94 = vcombine.high %v84, %v84
    %v95 = vcombine.high %v91, %v91
    %v96 = vlaneseq
    %v97 = vshrl.u32 %v96, 7
    %v98 = vsub.s32 0, %v97
    %v99 = vrot.slane %v70, %v98
    %v100 = vlaneseq
    %v101 = vshrl.u32 %v100, 7
    %v102 = vsub.s32 0, %v101
    %v103 = vrot.slane %v84, %v102
    %v104 = vlaneseq
    %v105 = vshrl.u32 %v104, 7
    %v106 = vsub.s32 0, %v105
    %v107 = vrot.slane %v92, %v106
    %v108 = vlaneseq
    %v109 = vshrl.u32 %v108, 7
    %v110 = vsub.s32 0, %v109
    %v111 = vrot.slane %v94, %v110
    %v112 = vlaneseq
    %v113 = vshrl.u32 %v112, 7
    %v114 = vsub.s32 0, %v113
    %v115 = vrot.slane %v77, %v114
    %v116 = vlaneseq
    %v117 = vshrl.u32 %v116, 7
    %v118 = vsub.s32 0, %v117
    %v119 = vrot.slane %v91, %v118
    %v120 = vlaneseq
    %v121 = vshrl.u32 %v120, 7
    %v122 = vsub.s32 0, %v121
    %v123 = vrot.slane %v93, %v122
    %v124 = vlaneseq
    %v125 = vshrl.u32 %v124, 7
    %v126 = vsub.s32 0, %v125
    %v127 = vrot.slane %v95, %v126
    %v136 = vmul.f32 %v99, %v45
    %v137 = vmul.f32 %v103, %v45
    %v138 = vmul.f32 %v107, %v45
    %v139 = vmul.f32 %v111, %v45
    %v140 = vmul.f32 %v115, %v45
    %v141 = vmul.f32 %v119, %v45
    %v142 = vmul.f32 %v123, %v45
    %v143 = vmul.f32 %v127, %v45
    %v144 = vpack.c.bf16 %v137, %v136
    %v145 = vpack.c.bf16 %v139, %v138
    %v146 = vpack.c.bf16 %v141, %v140
    %v147 = vpack.c.bf16 %v143, %v142
    %v148 = vld [vmem:[%s1] sm:$0xf]
    %v149 = vld [vmem:[%s1 + $0x4] sm:$0xf]
    %v150 = vld [vmem:[%s2] sm:$0xff]
    %v151 = vld [vmem:[%s2 + $0x8] sm:$0xff]
    %153 = vset.pattern.permute.xlu0 0
    %154 = vperm.xlu0 %153, %v150
    %v155 = vpop.permute.xlu0 %154
    %158 = vset.pattern.permute.xlu0 0
    %159 = vperm.xlu0 %158, %v151
    %v160 = vpop.permute.xlu0 %159
    %v164 = vunpack.c.l.b16 %v148
    %v165 = vunpack.c.l.b16 %v149
    %v166 = vpack.c.b16 %v165, %v164
    %vm167 = vcmask 523264
    %v169 = vsel %vm167, %v166, 0
    %171 = vmatprep.subr.bf16.mxu0 0
    %172 = vmatpush1.bf16.msra.mxu0 %v144
    %173 = vmatprep.subr.bf16.mxu0 0
    %174 = vmatpush1.bf16.msra.mxu0 %v145
    %175 = vmatprep.subr.bf16.mxu0 0
    %176 = vmatpush1.bf16.msra.mxu0 %v146
    %177 = vmatprep.subr.bf16.mxu0 0
    %178 = vmatpush1.bf16.msra.mxu0 %v147
    %179 = vmatprep.subr.bf16.mxu0 0
    %180 = vmatpush1.bf16.msra.mxu0 0
    %181 = vmatprep.subr.bf16.mxu0 0
    %182 = vmatpush1.bf16.msra.mxu0 0
    %183 = vmatprep.subr.bf16.mxu0 0
    %184 = vmatpush1.bf16.msra.mxu0 0
    %185 = vmatprep.subr.bf16.mxu0 0
    %186 = vmatpush1.bf16.msra.mxu0 0
    %187 = vmatprep.subr.bf16.mxu0 0
    %188 = vmatpush1.bf16.msra.mxu0 0
    %189 = vmatprep.subr.bf16.mxu0 0
    %190 = vmatpush1.bf16.msra.mxu0 0
    %191 = vmatprep.subr.bf16.mxu0 0
    %192 = vmatpush1.bf16.msra.mxu0 0
    %193 = vmatprep.subr.bf16.mxu0 0
    %194 = vmatpush1.bf16.msra.mxu0 0
    %195 = vmatprep.subr.bf16.mxu0 0
    %196 = vmatpush1.bf16.msra.mxu0 0
    %197 = vmatprep.subr.bf16.mxu0 0
    %198 = vmatpush1.bf16.msra.mxu0 0
    %199 = vmatprep.subr.bf16.mxu0 0
    %200 = vmatpush1.bf16.msra.mxu0 0
    %201 = vmatprep.subr.bf16.mxu0 0
    %202 = vmatpush1.bf16.msra.mxu0 0
    %203 = vmatprep.mubr.bf16.mxu0 0
    %204 = vmatmul.mubr.bf16.gmra.mrb[0].mxu0 %v169
    %v205 = vpop.f32.mrb[0].mxu0
    %v206 = vadd.f32 %v155, %v205
    %v207 = vpop.f32.mrb[0].mxu0
    %v208 = vpop.f32.mrb[0].mxu0
    %v209 = vadd.f32 %v160, %v208
    %v210 = vpop.f32.mrb[0].mxu0
    %211 = vdwg.mxu0
    %v212 = vmax.f32 %v206, 0.0
    %v213 = vmax.f32 %v209, 0.0
    %v214 = vld [vmem:[%s3] sm:$0x1]
    %v215 = vpack.c.bf16 %v212, %v212
    %v216 = vmul.f32 %v99, %v213
    %v217 = vmul.f32 %v103, %v213
    %v218 = vmul.f32 %v107, %v213
    %v219 = vmul.f32 %v111, %v213
    %v220 = vmul.f32 %v115, %v213
    %v221 = vmul.f32 %v119, %v213
    %v222 = vmul.f32 %v123, %v213
    %v223 = vmul.f32 %v127, %v213
    %v224 = vpack.c.bf16 %v217, %v216
    %v225 = vpack.c.bf16 %v219, %v218
    %v226 = vpack.c.bf16 %v221, %v220
    %v227 = vpack.c.bf16 %v223, %v222
    %v228 = vld [vmem:[%s4] sm:$0xf]
    %v229 = vld [vmem:[%s4 + $0x4] sm:$0xf]
    %v230 = vld [vmem:[%s5] sm:$0xff]
    %v231 = vld [vmem:[%s5 + $0x8] sm:$0xff]
    %233 = vset.pattern.permute.xlu0 0
    %234 = vperm.xlu0 %233, %v230
    %v235 = vpop.permute.xlu0 %234
    %238 = vset.pattern.permute.xlu0 0
    %239 = vperm.xlu0 %238, %v231
    %v240 = vpop.permute.xlu0 %239
    %v244 = vunpack.c.l.b16 %v228
    %v245 = vunpack.c.l.b16 %v229
    %v246 = vpack.c.b16 %v245, %v244
    %v248 = vsel %vm167, %v246, 0
    %250 = vmatprep.subr.bf16.mxu0 0
    %251 = vmatpush1.bf16.msra.mxu0 %v224
    %252 = vmatprep.subr.bf16.mxu0 0
    %253 = vmatpush1.bf16.msra.mxu0 %v225
    %254 = vmatprep.subr.bf16.mxu0 0
    %255 = vmatpush1.bf16.msra.mxu0 %v226
    %256 = vmatprep.subr.bf16.mxu0 0
    %257 = vmatpush1.bf16.msra.mxu0 %v227
    %258 = vmatprep.subr.bf16.mxu0 0
    %259 = vmatpush1.bf16.msra.mxu0 0
    %260 = vmatprep.subr.bf16.mxu0 0
    %261 = vmatpush1.bf16.msra.mxu0 0
    %262 = vmatprep.subr.bf16.mxu0 0
    %263 = vmatpush1.bf16.msra.mxu0 0
    %264 = vmatprep.subr.bf16.mxu0 0
    %265 = vmatpush1.bf16.msra.mxu0 0
    %266 = vmatprep.subr.bf16.mxu0 0
    %267 = vmatpush1.bf16.msra.mxu0 0
    %268 = vmatprep.subr.bf16.mxu0 0
    %269 = vmatpush1.bf16.msra.mxu0 0
    %270 = vmatprep.subr.bf16.mxu0 0
    %271 = vmatpush1.bf16.msra.mxu0 0
    %272 = vmatprep.subr.bf16.mxu0 0
    %273 = vmatpush1.bf16.msra.mxu0 0
    %274 = vmatprep.subr.bf16.mxu0 0
    %275 = vmatpush1.bf16.msra.mxu0 0
    %276 = vmatprep.subr.bf16.mxu0 0
    %277 = vmatpush1.bf16.msra.mxu0 0
    %278 = vmatprep.subr.bf16.mxu0 0
    %279 = vmatpush1.bf16.msra.mxu0 0
    %280 = vmatprep.subr.bf16.mxu0 0
    %281 = vmatpush1.bf16.msra.mxu0 0
    %282 = vmatprep.mubr.bf16.mxu0 0
    %283 = vmatmul.mubr.bf16.gmra.mrb[0].mxu0 %v248
    %v284 = vpop.f32.mrb[0].mxu0
    %v285 = vadd.f32 %v235, %v284
    %v286 = vpop.f32.mrb[0].mxu0
    %v287 = vpop.f32.mrb[0].mxu0
    %v288 = vadd.f32 %v240, %v287
    %v289 = vpop.f32.mrb[0].mxu0
    %290 = vdwg.mxu0
    %v291 = vmax.f32 %v285, 0.0
    %v292 = vmax.f32 %v288, 0.0
    %v293 = vld [vmem:[%s6] sm:$0x1]
    %v294 = vpack.c.bf16 %v291, %v291
    %vm295 = vcmask 64512
    %v297 = vsel %vm295, %v293, 0
    %vm299 = vcmask 1043456
    %v301 = vsel %vm299, %v294, 0
    %303 = vmatprep.subr.bf16.mxu0 0
    %304 = vmatpush1.bf16.msra.mxu0 %v301
    %305 = vmatprep.subr.bf16.mxu0 0
    %306 = vmatpush1.bf16.msra.mxu0 0
    %307 = vmatprep.subr.bf16.mxu0 0
    %308 = vmatpush1.bf16.msra.mxu0 0
    %309 = vmatprep.subr.bf16.mxu0 0
    %310 = vmatpush1.bf16.msra.mxu0 0
    %311 = vmatprep.subr.bf16.mxu0 0
    %312 = vmatpush1.bf16.msra.mxu0 0
    %313 = vmatprep.subr.bf16.mxu0 0
    %314 = vmatpush1.bf16.msra.mxu0 0
    %315 = vmatprep.subr.bf16.mxu0 0
    %316 = vmatpush1.bf16.msra.mxu0 0
    %317 = vmatprep.subr.bf16.mxu0 0
    %318 = vmatpush1.bf16.msra.mxu0 0
    %319 = vmatprep.subr.bf16.mxu0 0
    %320 = vmatpush1.bf16.msra.mxu0 0
    %321 = vmatprep.subr.bf16.mxu0 0
    %322 = vmatpush1.bf16.msra.mxu0 0
    %323 = vmatprep.subr.bf16.mxu0 0
    %324 = vmatpush1.bf16.msra.mxu0 0
    %325 = vmatprep.subr.bf16.mxu0 0
    %326 = vmatpush1.bf16.msra.mxu0 0
    %327 = vmatprep.subr.bf16.mxu0 0
    %328 = vmatpush1.bf16.msra.mxu0 0
    %329 = vmatprep.subr.bf16.mxu0 0
    %330 = vmatpush1.bf16.msra.mxu0 0
    %331 = vmatprep.subr.bf16.mxu0 0
    %332 = vmatpush1.bf16.msra.mxu0 0
    %333 = vmatprep.subr.bf16.mxu0 0
    %334 = vmatpush1.bf16.msra.mxu0 0
    %335 = vmatprep.mubr.bf16.mxu0 0
    %336 = vmatmul.mubr.bf16.gmra.mrb[0].mxu0 %v297
    %v337 = vpop.f32.mrb[0].mxu0
    %v338 = vadd.f32 0.0, %v337
    %v339 = vpop.f32.mrb[0].mxu0
    %v340 = vpop.f32.mrb[0].mxu0
    %v341 = vpop.f32.mrb[0].mxu0
    %342 = vdwg.mxu0
    %v344 = vsel %vm295, %v214, 0
    %v347 = vsel %vm299, %v215, 0
    %349 = vmatprep.subr.bf16.mxu0 0
    %350 = vmatpush1.bf16.msra.mxu0 %v347
    %351 = vmatprep.subr.bf16.mxu0 0
    %352 = vmatpush1.bf16.msra.mxu0 0
    %353 = vmatprep.subr.bf16.mxu0 0
    %354 = vmatpush1.bf16.msra.mxu0 0
    %355 = vmatprep.subr.bf16.mxu0 0
    %356 = vmatpush1.bf16.msra.mxu0 0
    %357 = vmatprep.subr.bf16.mxu0 0
    %358 = vmatpush1.bf16.msra.mxu0 0
    %359 = vmatprep.subr.bf16.mxu0 0
    %360 = vmatpush1.bf16.msra.mxu0 0
    %361 = vmatprep.subr.bf16.mxu0 0
    %362 = vmatpush1.bf16.msra.mxu0 0
    %363 = vmatprep.subr.bf16.mxu0 0
    %364 = vmatpush1.bf16.msra.mxu0 0
    %365 = vmatprep.subr.bf16.mxu0 0
    %366 = vmatpush1.bf16.msra.mxu0 0
    %367 = vmatprep.subr.bf16.mxu0 0
    %368 = vmatpush1.bf16.msra.mxu0 0
    %369 = vmatprep.subr.bf16.mxu0 0
    %370 = vmatpush1.bf16.msra.mxu0 0
    %371 = vmatprep.subr.bf16.mxu0 0
    %372 = vmatpush1.bf16.msra.mxu0 0
    %373 = vmatprep.subr.bf16.mxu0 0
    %374 = vmatpush1.bf16.msra.mxu0 0
    %375 = vmatprep.subr.bf16.mxu0 0
    %376 = vmatpush1.bf16.msra.mxu0 0
    %377 = vmatprep.subr.bf16.mxu0 0
    %378 = vmatpush1.bf16.msra.mxu0 0
    %379 = vmatprep.subr.bf16.mxu0 0
    %380 = vmatpush1.bf16.msra.mxu0 0
    %381 = vmatprep.mubr.bf16.mxu0 0
    %382 = vmatmul.mubr.bf16.gmra.mrb[0].mxu0 %v344
    %v383 = vpop.f32.mrb[0].mxu0
    %v384 = vadd.f32 %v338, %v383
    %v385 = vpop.f32.mrb[0].mxu0
    %v386 = vpop.f32.mrb[0].mxu0
    %v387 = vpop.f32.mrb[0].mxu0
    %388 = vdwg.mxu0
    %v389 = vmul.f32 %v99, %v292
    %v390 = vmul.f32 %v103, %v292
    %v391 = vmul.f32 %v107, %v292
    %v392 = vmul.f32 %v111, %v292
    %v393 = vmul.f32 %v115, %v292
    %v394 = vmul.f32 %v119, %v292
    %v395 = vmul.f32 %v123, %v292
    %v396 = vmul.f32 %v127, %v292
    %v397 = vpack.c.bf16 %v390, %v389
    %v398 = vpack.c.bf16 %v392, %v391
    %v399 = vpack.c.bf16 %v394, %v393
    %v400 = vpack.c.bf16 %v396, %v395
    %v401 = vld [vmem:[%s7] sm:$0xf]
    %v402 = vld [vmem:[%s8] sm:$0xff]
    %404 = vset.pattern.permute.xlu0 0
    %405 = vperm.xlu0 %404, %v402
    %v406 = vpop.permute.xlu0 %405
    %v409 = vsel %vm167, %v401, 0
    %411 = vmatprep.subr.bf16.mxu0 0
    %412 = vmatpush1.bf16.msra.mxu0 %v397
    %413 = vmatprep.subr.bf16.mxu0 0
    %414 = vmatpush1.bf16.msra.mxu0 %v398
    %415 = vmatprep.subr.bf16.mxu0 0
    %416 = vmatpush1.bf16.msra.mxu0 %v399
    %417 = vmatprep.subr.bf16.mxu0 0
    %418 = vmatpush1.bf16.msra.mxu0 %v400
    %419 = vmatprep.subr.bf16.mxu0 0
    %420 = vmatpush1.bf16.msra.mxu0 0
    %421 = vmatprep.subr.bf16.mxu0 0
    %422 = vmatpush1.bf16.msra.mxu0 0
    %423 = vmatprep.subr.bf16.mxu0 0
    %424 = vmatpush1.bf16.msra.mxu0 0
    %425 = vmatprep.subr.bf16.mxu0 0
    %426 = vmatpush1.bf16.msra.mxu0 0
    %427 = vmatprep.subr.bf16.mxu0 0
    %428 = vmatpush1.bf16.msra.mxu0 0
    %429 = vmatprep.subr.bf16.mxu0 0
    %430 = vmatpush1.bf16.msra.mxu0 0
    %431 = vmatprep.subr.bf16.mxu0 0
    %432 = vmatpush1.bf16.msra.mxu0 0
    %433 = vmatprep.subr.bf16.mxu0 0
    %434 = vmatpush1.bf16.msra.mxu0 0
    %435 = vmatprep.subr.bf16.mxu0 0
    %436 = vmatpush1.bf16.msra.mxu0 0
    %437 = vmatprep.subr.bf16.mxu0 0
    %438 = vmatpush1.bf16.msra.mxu0 0
    %439 = vmatprep.subr.bf16.mxu0 0
    %440 = vmatpush1.bf16.msra.mxu0 0
    %441 = vmatprep.subr.bf16.mxu0 0
    %442 = vmatpush1.bf16.msra.mxu0 0
    %443 = vmatprep.mubr.bf16.mxu0 0
    %444 = vmatmul.mubr.bf16.gmra.mrb[0].mxu0 %v409
    %v445 = vpop.f32.mrb[0].mxu0
    %v446 = vadd.f32 %v406, %v445
    %v447 = vpop.f32.mrb[0].mxu0
    %v448 = vpop.f32.mrb[0].mxu0
    %v449 = vpop.f32.mrb[0].mxu0
    %450 = vdwg.mxu0
    %v451 = vmax.f32 %v446, 0.0
    %v452 = vld [vmem:[%s9] sm:$0x1]
    %v453 = vpack.c.bf16 %v451, %v451
    %v455 = vsel %vm295, %v452, 0
    %v458 = vsel %vm299, %v453, 0
    %460 = vmatprep.subr.bf16.mxu0 0
    %461 = vmatpush1.bf16.msra.mxu0 %v458
    %462 = vmatprep.subr.bf16.mxu0 0
    %463 = vmatpush1.bf16.msra.mxu0 0
    %464 = vmatprep.subr.bf16.mxu0 0
    %465 = vmatpush1.bf16.msra.mxu0 0
    %466 = vmatprep.subr.bf16.mxu0 0
    %467 = vmatpush1.bf16.msra.mxu0 0
    %468 = vmatprep.subr.bf16.mxu0 0
    %469 = vmatpush1.bf16.msra.mxu0 0
    %470 = vmatprep.subr.bf16.mxu0 0
    %471 = vmatpush1.bf16.msra.mxu0 0
    %472 = vmatprep.subr.bf16.mxu0 0
    %473 = vmatpush1.bf16.msra.mxu0 0
    %474 = vmatprep.subr.bf16.mxu0 0
    %475 = vmatpush1.bf16.msra.mxu0 0
    %476 = vmatprep.subr.bf16.mxu0 0
    %477 = vmatpush1.bf16.msra.mxu0 0
    %478 = vmatprep.subr.bf16.mxu0 0
    %479 = vmatpush1.bf16.msra.mxu0 0
    %480 = vmatprep.subr.bf16.mxu0 0
    %481 = vmatpush1.bf16.msra.mxu0 0
    %482 = vmatprep.subr.bf16.mxu0 0
    %483 = vmatpush1.bf16.msra.mxu0 0
    %484 = vmatprep.subr.bf16.mxu0 0
    %485 = vmatpush1.bf16.msra.mxu0 0
    %486 = vmatprep.subr.bf16.mxu0 0
    %487 = vmatpush1.bf16.msra.mxu0 0
    %488 = vmatprep.subr.bf16.mxu0 0
    %489 = vmatpush1.bf16.msra.mxu0 0
    %490 = vmatprep.subr.bf16.mxu0 0
    %491 = vmatpush1.bf16.msra.mxu0 0
    %492 = vmatprep.mubr.bf16.mxu0 0
    %493 = vmatmul.mubr.bf16.gmra.mrb[0].mxu0 %v455
    %v494 = vpop.f32.mrb[0].mxu0
    %v495 = vadd.f32 0.0, %v494
    %v496 = vpop.f32.mrb[0].mxu0
    %v497 = vpop.f32.mrb[0].mxu0
    %v498 = vpop.f32.mrb[0].mxu0
    %499 = vdwg.mxu0
    %v500 = vadd.f32 %v384, %v495
    %v501 = vpack.c.bf16 %v500, %v500
    %v502 = vld [vmem:[%s10] sm:$0xf]
    %v503 = vld [vmem:[%s10 + $0x4] sm:$0xf]
    %v504 = vld [vmem:[%s10 + $0x8] sm:$0xf]
    %v505 = vld [vmem:[%s10 + $0xc] sm:$0xf]
    %v506 = vld [vmem:[%s10 + $0x10] sm:$0xf]
    %v507 = vld [vmem:[%s10 + $0x14] sm:$0xf]
    %v508 = vld [vmem:[%s10 + $0x18] sm:$0xf]
    %v509 = vld [vmem:[%s10 + $0x1c] sm:$0xf]
    %v510 = vld [vmem:[%s10 + $0x20] sm:$0xf]
    %v511 = vld [vmem:[%s10 + $0x24] sm:$0xf]
    %v512 = vld [vmem:[%s10 + $0x28] sm:$0xf]
    %v513 = vld [vmem:[%s10 + $0x2c] sm:$0xf]
    %v514 = vld [vmem:[%s10 + $0x30] sm:$0xf]
    %v515 = vld [vmem:[%s10 + $0x34] sm:$0xf]
    %v516 = vld [vmem:[%s10 + $0x38] sm:$0xf]
    %v517 = vld [vmem:[%s10 + $0x3c] sm:$0xf]
    %v518 = vld [vmem:[#allocation2] sm:$0x1]
    %520 = vset.pattern.permute.xlu0 0
    %521 = vperm.xlu0 %520, %v518
    %v522 = vpop.permute.xlu0 %521
    %v524 = vlaneseq
    %v525 = vshrl.u32 %v524, 7
    %v526 = vsub.s32 0, %v525
    %v527 = vrot.slane %v522, %v526
    %v544 = vunpack.c.l.b16 %v502
    %v545 = vunpack.c.l.b16 %v503
    %v546 = vunpack.c.l.b16 %v504
    %v547 = vunpack.c.l.b16 %v505
    %v548 = vunpack.c.l.b16 %v506
    %v549 = vunpack.c.l.b16 %v507
    %v550 = vunpack.c.l.b16 %v508
    %v551 = vunpack.c.l.b16 %v509
    %v552 = vunpack.c.l.b16 %v510
    %v553 = vunpack.c.l.b16 %v511
    %v554 = vunpack.c.l.b16 %v512
    %v555 = vunpack.c.l.b16 %v513
    %v556 = vunpack.c.l.b16 %v514
    %v557 = vunpack.c.l.b16 %v515
    %v558 = vunpack.c.l.b16 %v516
    %v559 = vunpack.c.l.b16 %v517
    %v560 = vpack.c.b16 %v545, %v544
    %v561 = vpack.c.b16 %v547, %v546
    %v562 = vpack.c.b16 %v549, %v548
    %v563 = vpack.c.b16 %v551, %v550
    %v564 = vpack.c.b16 %v553, %v552
    %v565 = vpack.c.b16 %v555, %v554
    %v566 = vpack.c.b16 %v557, %v556
    %v567 = vpack.c.b16 %v559, %v558
    %576 = vmatprep.subr.bf16.mxu0 0
    %577 = vmatpush1.bf16.msra.mxu0 %v560
    %578 = vmatprep.subr.bf16.mxu0 0
    %579 = vmatpush1.bf16.msra.mxu0 %v561
    %580 = vmatprep.subr.bf16.mxu0 0
    %581 = vmatpush1.bf16.msra.mxu0 %v562
    %582 = vmatprep.subr.bf16.mxu0 0
    %583 = vmatpush1.bf16.msra.mxu0 %v563
    %584 = vmatprep.subr.bf16.mxu0 0
    %585 = vmatpush1.bf16.msra.mxu0 %v564
    %586 = vmatprep.subr.bf16.mxu0 0
    %587 = vmatpush1.bf16.msra.mxu0 %v565
    %588 = vmatprep.subr.bf16.mxu0 0
    %589 = vmatpush1.bf16.msra.mxu0 %v566
    %590 = vmatprep.subr.bf16.mxu0 0
    %591 = vmatpush1.bf16.msra.mxu0 %v567
    %592 = vmatprep.subr.bf16.mxu0 0
    %593 = vmatpush1.bf16.msra.mxu0 0
    %594 = vmatprep.subr.bf16.mxu0 0
    %595 = vmatpush1.bf16.msra.mxu0 0
    %596 = vmatprep.subr.bf16.mxu0 0
    %597 = vmatpush1.bf16.msra.mxu0 0
    %598 = vmatprep.subr.bf16.mxu0 0
    %599 = vmatpush1.bf16.msra.mxu0 0
    %600 = vmatprep.subr.bf16.mxu0 0
    %601 = vmatpush1.bf16.msra.mxu0 0
    %602 = vmatprep.subr.bf16.mxu0 0
    %603 = vmatpush1.bf16.msra.mxu0 0
    %604 = vmatprep.subr.bf16.mxu0 0
    %605 = vmatpush1.bf16.msra.mxu0 0
    %606 = vmatprep.subr.bf16.mxu0 0
    %607 = vmatpush1.bf16.msra.mxu0 0
    %608 = vmatprep.mubr.bf16.mxu0 0
    %609 = vmatmul.mubr.bf16.gmra.mrb[0].mxu0 %v501
    %v610 = vpop.f32.mrb[0].mxu0
    %v611 = vadd.f32 %v527, %v610
    %v612 = vpop.f32.mrb[0].mxu0
    %v613 = vpop.f32.mrb[0].mxu0
    %v614 = vpop.f32.mrb[0].mxu0
    %615 = vdwg.mxu0
    %vm616 = vcmask 57344
    %617 = vst.msk [vmem:[#allocation3] sm:$0x1] %vm616, %v611
    // Predicated region
    $region50: #{tpu_custom_call.1} parent=1 // pred_check
      _
    $region51: #{tpu_custom_call.1} parent=1 // pred_check_branch
      %619 = sbr.rel (0) target = $region53
    $region52: #{tpu_custom_call.1} parent=1 // pred_region
      %s621 = ssub.s32 16, 16
      %622 = vsyncadd [#allocation4], %s621
      %s624 = sshll.u32 [#allocation3], 4
      %s625 = int_to_ptr.vmem [resolvable:$true] %s624
      %627 = dma.vmem_to_hbm [thread:$0]  %s625, 16, %s12, [#allocation4]
    $region53: #{tpu_custom_call.1} parent=1 // pred_fallthru
      _
    // Predicated region
    $region54: #{tpu_custom_call.1} parent=1 // pred_check
      _
    $region55: #{tpu_custom_call.1} parent=1 // pred_check_branch
      %629 = sbr.rel (0) target = $region57
    $region56: #{tpu_custom_call.1} parent=1 // pred_region
      %630 = dma.done [#allocation4], 16
    $region57: #{tpu_custom_call.1} parent=1 // pred_fallthru
      _
    %631 = vsyncpa [#allocation4], 1

</llo_original>
